<compile_context>
chip_gen: v7x
topology: tpu7x:2x2x1
jax: 0.10.0
libtpu: 0.0.40
codegen_flags: <defaults>
</compile_context>

<pallas_src>
import functools

import numpy as np
import jax
import jax.numpy as jnp
from jax.experimental import pallas as pl
from jax.experimental.pallas import tpu as pltpu


# Deterministic parameter init (matches LearnableFPActivation(precision_bits=4)).
FP4_INIT_VALS = [0.0, 0.25, 0.5, 0.75, 1.0, 1.5, 2.0, 3.0,
                 4.0, 6.0, 8.0, 12.0, -0.5, -1.0, -2.0, -4.0]

_LANES = 128


def _fp4_softmax_kernel(vals_ref, thr_ref, x_ref, g_ref, o_ref, *, group):
    """vals_ref: (V,)   f32 SMEM  sorted quantization values
       thr_ref:  (V-1,) f32 SMEM  midpoints between adjacent sorted values
       x_ref:    (T, 128) VMEM    each row packs 128/group independent softmax groups
       g_ref:    (128, 128) f32   block-diagonal ones (group x group blocks)
       o_ref:    (T, 128) VMEM    quantized softmax output
    """
    x = x_ref[...].astype(jnp.float32)
    lane_pos = jax.lax.broadcasted_iota(jnp.int32, x.shape, 1) % group

    # ---- exact per-group max -------------------------------------------------
    # Symmetric rolled-window max: after the loop m[i] = max(x[i-r .. i+r]) with
    # r = group//2 - 1 (windows never leave the 128-lane row that matters for the
    # lanes we use). The windows at in-group positions group//2-1 and group//2
    # stay inside the group and together cover all of it, so their max is the
    # exact group max. Rolls run on the XLU slot, not the VALU bottleneck.
    m = x
    shift, covered, radius = 1, 0, group // 2 - 1
    while covered < radius:
        m = jnp.maximum(m, jnp.maximum(pltpu.roll(m, shift, 1),
                                       pltpu.roll(m, _LANES - shift, 1)))
        covered += shift
        shift *= 2

    G = g_ref[...]
    lo, hi = group // 2 - 1, group // 2
    b_lo = jnp.where(lane_pos == lo, m, 0.0)
    b_hi = jnp.where(lane_pos == hi, m, 0.0)
    # Block-diagonal matmul broadcasts the single nonzero per group to every
    # lane of that group (MXU is otherwise idle in this kernel).
    m_lo = jnp.dot(b_lo, G, preferred_element_type=jnp.float32)
    m_hi = jnp.dot(b_hi, G, preferred_element_type=jnp.float32)
    gmax = jnp.maximum(m_lo, m_hi)          # per-group max, constant within a group

    # ---- softmax ---------------------------------------------------------------
    e = jnp.exp(x - gmax)                   # EUP
    # hi/lo split keeps the segmented sum f32-accurate even if the MXU truncates
    # f32 operands to bf16 internally.
    e_hi = e.astype(jnp.bfloat16).astype(jnp.float32)
    e_lo = e - e_hi
    s_g = (jnp.dot(e_hi, G, preferred_element_type=jnp.float32) +
           jnp.dot(e_lo, G, preferred_element_type=jnp.float32))
    p = e * pl.reciprocal(s_g, approx=True)  # divide moved onto the EUP slot

    # ---- nearest-value quantization: sorted midpoint threshold cascade --------
    n_vals = vals_ref.shape[0]
    v = [vals_ref[i] for i in range(n_vals)]        # scalar SMEM reads, hoisted
    t = [thr_ref[i] for i in range(n_vals - 1)]
    q = jnp.where(p > t[0], v[1], v[0])             # strict '>' => ties -> lower value
    for i in range(1, n_vals - 1):
        q = jnp.where(p > t[i], v[i + 1], q)

    o_ref[...] = q.astype(o_ref.dtype)


def _pick_tile(packed_rows, cap=2048):
    """Largest row-tile (multiple of 8) dividing packed_rows, <= cap, preferring
    >=2 grid steps so the v7x second TensorCore gets work."""
    cands = [t for t in range(8, min(cap, packed_rows) + 1, 8)
             if packed_rows % t == 0]
    if not cands:
        return packed_rows
    multi = [t for t in cands if packed_rows // t >= 2]
    return max(multi) if multi else max(cands)


def fp4_softmax(x, fp_values):
    """FP4Softmax forward: softmax over dim=-1, then nearest-value quantization."""
    orig_shape = x.shape
    n = int(orig_shape[-1])
    if n < 2 or _LANES % n != 0 or (n & (n - 1)) != 0:
        # TODO(synk): non power-of-two (or >128) softmax widths need an unpacked
        # layout fallback; not implemented here.
        raise NotImplementedError(f"softmax width {n} not supported by this kernel")

    rows = int(np.prod(orig_shape[:-1]))
    groups_per_row = _LANES // n

    x2 = x.reshape(rows, n)
    pad = (-rows) % groups_per_row
    if pad:
        x2 = jnp.concatenate([x2, jnp.zeros((pad, n), x2.dtype)], axis=0)
    packed_rows = (rows + pad) // groups_per_row
    xp = x2.reshape(packed_rows, _LANES)   # free contiguous reshape -> lane-dense

    # torch.sort of the learnable parameter + midpoint thresholds (wrapper glue).
    vals_sorted = jnp.sort(fp_values.astype(jnp.float32))
    thresholds = 0.5 * (vals_sorted[:-1] + vals_sorted[1:])

    # Block-diagonal ones matrix for segmented (per-group) MXU reductions.
    lane = np.arange(_LANES)
    G = jnp.asarray((lane[:, None] // n) == (lane[None, :] // n), dtype=jnp.float32)

    tile = _pick_tile(packed_rows)
    grid = (packed_rows // tile,)

    kernel = functools.partial(_fp4_softmax_kernel, group=n)

    out = pl.pallas_call(
        kernel,
        out_shape=jax.ShapeDtypeStruct((packed_rows, _LANES), x.dtype),
        grid_spec=pltpu.PrefetchScalarGridSpec(
            num_scalar_prefetch=0,
            grid=grid,
            in_specs=[
                pl.BlockSpec(memory_space=pltpu.MemorySpace.SMEM),   # sorted fp4 values
                pl.BlockSpec(memory_space=pltpu.MemorySpace.SMEM),   # midpoints
                pl.BlockSpec((tile, _LANES), lambda i: (i, 0)),      # packed input rows
                pl.BlockSpec((_LANES, _LANES), lambda i: (0, 0)),    # block-diag ones
            ],
            out_specs=pl.BlockSpec((tile, _LANES), lambda i: (i, 0)),
        ),
        compiler_params=pltpu.CompilerParams(
            dimension_semantics=("parallel",),
        ),
    )(vals_sorted, thresholds, xp, G)

    out = out.reshape(packed_rows * groups_per_row, n)[:rows]
    return out.reshape(orig_shape)


def _reference(x, fp_values):
    vals = jnp.sort(fp_values.astype(jnp.float32))
    p = jax.nn.softmax(x.astype(jnp.float32), axis=-1)
    d = jnp.abs(p[..., None] - vals)            # (..., 16)
    idx = jnp.argmin(d, axis=-1)                # first occurrence == lower value on tie
    return vals[idx].astype(x.dtype)


if __name__ == "__main__":
    key = jax.random.PRNGKey(0)
    x = jax.random.normal(key, (2, 4, 16, 16), dtype=jnp.float32)
    fp_values = jnp.array(FP4_INIT_VALS, dtype=jnp.float32)

    out = fp4_softmax(x, fp_values)
    jax.block_until_ready(out)

    ref = _reference(x, fp_values)
    mismatch = float(jnp.mean((out != ref).astype(jnp.float32)))
    # Allow a vanishingly small fraction of tie-boundary flips due to exp/recip ulp diffs.
    assert mismatch < 0.01, f"kernel/reference mismatch fraction {mismatch}"

    print("KERNEL_OK")
</pallas_src>

<mosaic_0001>
module attributes {stable_mosaic.version = 11 : i64} {
  func.func @_fp4_softmax_kernel(%arg0: i32, %arg1: memref<16xf32, #tpu.memory_space<smem>>, %arg2: memref<15xf32, #tpu.memory_space<smem>>, %arg3: memref<8x128xf32, #tpu.memory_space<vmem>>, %arg4: memref<128x128xf32, #tpu.memory_space<vmem>>, %arg5: memref<8x128xf32, #tpu.memory_space<vmem>>) attributes {dimension_semantics = [#tpu.dimension_semantics<parallel>], iteration_bounds = array<i64: 2>, scalar_prefetch = 0 : i64, scratch_operands = 0 : i64, tpu.core_type = #tpu.core_type<tc>, window_params = [{transform_indices = @transform_0, window_bounds = array<i64: 16>}, {transform_indices = @transform_1, window_bounds = array<i64: 15>}, {transform_indices = @transform_2, window_bounds = array<i64: 8, 128>}, {pipeline_mode = #tpu.pipeline_mode<synchronous>, transform_indices = @transform_3, window_bounds = array<i64: 128, 128>}, {transform_indices = @transform_4, window_bounds = array<i64: 8, 128>}]} {
    %c0 = arith.constant 0 : index
    %c0_0 = arith.constant 0 : index
    %0 = vector.load %arg3[%c0, %c0_0] : memref<8x128xf32, #tpu.memory_space<vmem>>, vector<8x128xf32>
    %1 = tpu.iota {dimensions = array<i32: 1>} : vector<8x128xi32>
    %c16_i32 = arith.constant 16 : i32
    %c0_i32 = arith.constant 0 : i32
    %2 = arith.cmpi eq, %c16_i32, %c0_i32 : i32
    %c1_i32 = arith.constant 1 : i32
    %3 = arith.select %2, %c1_i32, %c16_i32 : i32
    %4 = vector.broadcast %3 : i32 to vector<8x128xi32>
    %5 = arith.remsi %1, %4 : vector<8x128xi32>
    %c0_i32_1 = arith.constant 0 : i32
    %6 = vector.broadcast %c0_i32_1 : i32 to vector<8x128xi32>
    %7 = arith.cmpi ne, %5, %6 : vector<8x128xi32>
    %c0_i32_2 = arith.constant 0 : i32
    %8 = vector.broadcast %c0_i32_2 : i32 to vector<8x128xi32>
    %9 = arith.cmpi slt, %5, %8 : vector<8x128xi32>
    %c0_i32_3 = arith.constant 0 : i32
    %10 = arith.cmpi slt, %3, %c0_i32_3 : i32
    %11 = vector.broadcast %10 : i1 to vector<8x128xi1>
    %12 = vector.broadcast %11 : vector<8x128xi1> to vector<8x128xi1>
    %13 = arith.xori %9, %12 : vector<8x128xi1>
    %14 = arith.andi %13, %7 : vector<8x128xi1>
    %15 = vector.broadcast %3 : i32 to vector<8x128xi32>
    %16 = arith.addi %5, %15 : vector<8x128xi32>
    %17 = arith.select %14, %16, %5 : vector<8x128xi1>, vector<8x128xi32>
    %c1_i32_4 = arith.constant 1 : i32
    %18 = tpu.dynamic_rotate %0 by %c1_i32_4 dim 1 : vector<8x128xf32>, i32 -> vector<8x128xf32>
    %c127_i32 = arith.constant 127 : i32
    %19 = tpu.dynamic_rotate %0 by %c127_i32 dim 1 : vector<8x128xf32>, i32 -> vector<8x128xf32>
    %20 = arith.maximumf %18, %19 : vector<8x128xf32>
    %21 = arith.maximumf %0, %20 : vector<8x128xf32>
    %c2_i32 = arith.constant 2 : i32
    %22 = tpu.dynamic_rotate %21 by %c2_i32 dim 1 : vector<8x128xf32>, i32 -> vector<8x128xf32>
    %c126_i32 = arith.constant 126 : i32
    %23 = tpu.dynamic_rotate %21 by %c126_i32 dim 1 : vector<8x128xf32>, i32 -> vector<8x128xf32>
    %24 = arith.maximumf %22, %23 : vector<8x128xf32>
    %25 = arith.maximumf %21, %24 : vector<8x128xf32>
    %c4_i32 = arith.constant 4 : i32
    %26 = tpu.dynamic_rotate %25 by %c4_i32 dim 1 : vector<8x128xf32>, i32 -> vector<8x128xf32>
    %c124_i32 = arith.constant 124 : i32
    %27 = tpu.dynamic_rotate %25 by %c124_i32 dim 1 : vector<8x128xf32>, i32 -> vector<8x128xf32>
    %28 = arith.maximumf %26, %27 : vector<8x128xf32>
    %29 = arith.maximumf %25, %28 : vector<8x128xf32>
    %c0_5 = arith.constant 0 : index
    %c0_6 = arith.constant 0 : index
    %30 = vector.load %arg4[%c0_5, %c0_6] : memref<128x128xf32, #tpu.memory_space<vmem>>, vector<128x128xf32>
    %c7_i32 = arith.constant 7 : i32
    %31 = vector.broadcast %c7_i32 : i32 to vector<8x128xi32>
    %32 = arith.cmpi eq, %17, %31 : vector<8x128xi32>
    %cst = arith.constant 0.000000e+00 : f32
    %33 = vector.broadcast %cst : f32 to vector<8x128xf32>
    %34 = arith.select %32, %29, %33 : vector<8x128xi1>, vector<8x128xf32>
    %c8_i32 = arith.constant 8 : i32
    %35 = vector.broadcast %c8_i32 : i32 to vector<8x128xi32>
    %36 = arith.cmpi eq, %17, %35 : vector<8x128xi32>
    %cst_7 = arith.constant 0.000000e+00 : f32
    %37 = vector.broadcast %cst_7 : f32 to vector<8x128xf32>
    %38 = arith.select %36, %29, %37 : vector<8x128xi1>, vector<8x128xf32>
    %cst_8 = arith.constant dense<0.000000e+00> : vector<8x128xf32>
    %39 = tpu.matmul %34, %30, %cst_8 {dimension_numbers = #tpu.dot_dimension_numbers<[1], [0], [0], [1], [0, 0, 1, 1], [], []>} : vector<8x128xf32>, vector<128x128xf32>, vector<8x128xf32> -> vector<8x128xf32>
    %cst_9 = arith.constant dense<0.000000e+00> : vector<8x128xf32>
    %40 = tpu.matmul %38, %30, %cst_9 {dimension_numbers = #tpu.dot_dimension_numbers<[1], [0], [0], [1], [0, 0, 1, 1], [], []>} : vector<8x128xf32>, vector<128x128xf32>, vector<8x128xf32> -> vector<8x128xf32>
    %41 = arith.maximumf %39, %40 : vector<8x128xf32>
    %42 = arith.subf %0, %41 : vector<8x128xf32>
    %43 = math.exp %42 : vector<8x128xf32>
    %44 = arith.truncf %43 : vector<8x128xf32> to vector<8x128xbf16>
    %45 = arith.extf %44 : vector<8x128xbf16> to vector<8x128xf32>
    %46 = arith.subf %43, %45 : vector<8x128xf32>
    %cst_10 = arith.constant dense<0.000000e+00> : vector<8x128xf32>
    %47 = tpu.matmul %45, %30, %cst_10 {dimension_numbers = #tpu.dot_dimension_numbers<[1], [0], [0], [1], [0, 0, 1, 1], [], []>} : vector<8x128xf32>, vector<128x128xf32>, vector<8x128xf32> -> vector<8x128xf32>
    %cst_11 = arith.constant dense<0.000000e+00> : vector<8x128xf32>
    %48 = tpu.matmul %46, %30, %cst_11 {dimension_numbers = #tpu.dot_dimension_numbers<[1], [0], [0], [1], [0, 0, 1, 1], [], []>} : vector<8x128xf32>, vector<128x128xf32>, vector<8x128xf32> -> vector<8x128xf32>
    %49 = arith.addf %47, %48 : vector<8x128xf32>
    %50 = tpu.reciprocal %49 {approx = true} : vector<8x128xf32> -> vector<8x128xf32>
    %51 = arith.mulf %43, %50 : vector<8x128xf32>
    %c0_12 = arith.constant 0 : index
    %52 = memref.load %arg1[%c0_12] : memref<16xf32, #tpu.memory_space<smem>>
    %c1 = arith.constant 1 : index
    %53 = memref.load %arg1[%c1] : memref<16xf32, #tpu.memory_space<smem>>
    %c2 = arith.constant 2 : index
    %54 = memref.load %arg1[%c2] : memref<16xf32, #tpu.memory_space<smem>>
    %c3 = arith.constant 3 : index
    %55 = memref.load %arg1[%c3] : memref<16xf32, #tpu.memory_space<smem>>
    %c4 = arith.constant 4 : index
    %56 = memref.load %arg1[%c4] : memref<16xf32, #tpu.memory_space<smem>>
    %c5 = arith.constant 5 : index
    %57 = memref.load %arg1[%c5] : memref<16xf32, #tpu.memory_space<smem>>
    %c6 = arith.constant 6 : index
    %58 = memref.load %arg1[%c6] : memref<16xf32, #tpu.memory_space<smem>>
    %c7 = arith.constant 7 : index
    %59 = memref.load %arg1[%c7] : memref<16xf32, #tpu.memory_space<smem>>
    %c8 = arith.constant 8 : index
    %60 = memref.load %arg1[%c8] : memref<16xf32, #tpu.memory_space<smem>>
    %c9 = arith.constant 9 : index
    %61 = memref.load %arg1[%c9] : memref<16xf32, #tpu.memory_space<smem>>
    %c10 = arith.constant 10 : index
    %62 = memref.load %arg1[%c10] : memref<16xf32, #tpu.memory_space<smem>>
    %c11 = arith.constant 11 : index
    %63 = memref.load %arg1[%c11] : memref<16xf32, #tpu.memory_space<smem>>
    %c12 = arith.constant 12 : index
    %64 = memref.load %arg1[%c12] : memref<16xf32, #tpu.memory_space<smem>>
    %c13 = arith.constant 13 : index
    %65 = memref.load %arg1[%c13] : memref<16xf32, #tpu.memory_space<smem>>
    %c14 = arith.constant 14 : index
    %66 = memref.load %arg1[%c14] : memref<16xf32, #tpu.memory_space<smem>>
    %c15 = arith.constant 15 : index
    %67 = memref.load %arg1[%c15] : memref<16xf32, #tpu.memory_space<smem>>
    %c0_13 = arith.constant 0 : index
    %68 = memref.load %arg2[%c0_13] : memref<15xf32, #tpu.memory_space<smem>>
    %c1_14 = arith.constant 1 : index
    %69 = memref.load %arg2[%c1_14] : memref<15xf32, #tpu.memory_space<smem>>
    %c2_15 = arith.constant 2 : index
    %70 = memref.load %arg2[%c2_15] : memref<15xf32, #tpu.memory_space<smem>>
    %c3_16 = arith.constant 3 : index
    %71 = memref.load %arg2[%c3_16] : memref<15xf32, #tpu.memory_space<smem>>
    %c4_17 = arith.constant 4 : index
    %72 = memref.load %arg2[%c4_17] : memref<15xf32, #tpu.memory_space<smem>>
    %c5_18 = arith.constant 5 : index
    %73 = memref.load %arg2[%c5_18] : memref<15xf32, #tpu.memory_space<smem>>
    %c6_19 = arith.constant 6 : index
    %74 = memref.load %arg2[%c6_19] : memref<15xf32, #tpu.memory_space<smem>>
    %c7_20 = arith.constant 7 : index
    %75 = memref.load %arg2[%c7_20] : memref<15xf32, #tpu.memory_space<smem>>
    %c8_21 = arith.constant 8 : index
    %76 = memref.load %arg2[%c8_21] : memref<15xf32, #tpu.memory_space<smem>>
    %c9_22 = arith.constant 9 : index
    %77 = memref.load %arg2[%c9_22] : memref<15xf32, #tpu.memory_space<smem>>
    %c10_23 = arith.constant 10 : index
    %78 = memref.load %arg2[%c10_23] : memref<15xf32, #tpu.memory_space<smem>>
    %c11_24 = arith.constant 11 : index
    %79 = memref.load %arg2[%c11_24] : memref<15xf32, #tpu.memory_space<smem>>
    %c12_25 = arith.constant 12 : index
    %80 = memref.load %arg2[%c12_25] : memref<15xf32, #tpu.memory_space<smem>>
    %c13_26 = arith.constant 13 : index
    %81 = memref.load %arg2[%c13_26] : memref<15xf32, #tpu.memory_space<smem>>
    %c14_27 = arith.constant 14 : index
    %82 = memref.load %arg2[%c14_27] : memref<15xf32, #tpu.memory_space<smem>>
    %83 = vector.broadcast %68 : f32 to vector<8x128xf32>
    %84 = arith.cmpf ogt, %51, %83 : vector<8x128xf32>
    %85 = vector.broadcast %53 : f32 to vector<8x128xf32>
    %86 = vector.broadcast %52 : f32 to vector<8x128xf32>
    %87 = arith.select %84, %85, %86 : vector<8x128xi1>, vector<8x128xf32>
    %88 = vector.broadcast %69 : f32 to vector<8x128xf32>
    %89 = arith.cmpf ogt, %51, %88 : vector<8x128xf32>
    %90 = vector.broadcast %54 : f32 to vector<8x128xf32>
    %91 = arith.select %89, %90, %87 : vector<8x128xi1>, vector<8x128xf32>
    %92 = vector.broadcast %70 : f32 to vector<8x128xf32>
    %93 = arith.cmpf ogt, %51, %92 : vector<8x128xf32>
    %94 = vector.broadcast %55 : f32 to vector<8x128xf32>
    %95 = arith.select %93, %94, %91 : vector<8x128xi1>, vector<8x128xf32>
    %96 = vector.broadcast %71 : f32 to vector<8x128xf32>
    %97 = arith.cmpf ogt, %51, %96 : vector<8x128xf32>
    %98 = vector.broadcast %56 : f32 to vector<8x128xf32>
    %99 = arith.select %97, %98, %95 : vector<8x128xi1>, vector<8x128xf32>
    %100 = vector.broadcast %72 : f32 to vector<8x128xf32>
    %101 = arith.cmpf ogt, %51, %100 : vector<8x128xf32>
    %102 = vector.broadcast %57 : f32 to vector<8x128xf32>
    %103 = arith.select %101, %102, %99 : vector<8x128xi1>, vector<8x128xf32>
    %104 = vector.broadcast %73 : f32 to vector<8x128xf32>
    %105 = arith.cmpf ogt, %51, %104 : vector<8x128xf32>
    %106 = vector.broadcast %58 : f32 to vector<8x128xf32>
    %107 = arith.select %105, %106, %103 : vector<8x128xi1>, vector<8x128xf32>
    %108 = vector.broadcast %74 : f32 to vector<8x128xf32>
    %109 = arith.cmpf ogt, %51, %108 : vector<8x128xf32>
    %110 = vector.broadcast %59 : f32 to vector<8x128xf32>
    %111 = arith.select %109, %110, %107 : vector<8x128xi1>, vector<8x128xf32>
    %112 = vector.broadcast %75 : f32 to vector<8x128xf32>
    %113 = arith.cmpf ogt, %51, %112 : vector<8x128xf32>
    %114 = vector.broadcast %60 : f32 to vector<8x128xf32>
    %115 = arith.select %113, %114, %111 : vector<8x128xi1>, vector<8x128xf32>
    %116 = vector.broadcast %76 : f32 to vector<8x128xf32>
    %117 = arith.cmpf ogt, %51, %116 : vector<8x128xf32>
    %118 = vector.broadcast %61 : f32 to vector<8x128xf32>
    %119 = arith.select %117, %118, %115 : vector<8x128xi1>, vector<8x128xf32>
    %120 = vector.broadcast %77 : f32 to vector<8x128xf32>
    %121 = arith.cmpf ogt, %51, %120 : vector<8x128xf32>
    %122 = vector.broadcast %62 : f32 to vector<8x128xf32>
    %123 = arith.select %121, %122, %119 : vector<8x128xi1>, vector<8x128xf32>
    %124 = vector.broadcast %78 : f32 to vector<8x128xf32>
    %125 = arith.cmpf ogt, %51, %124 : vector<8x128xf32>
    %126 = vector.broadcast %63 : f32 to vector<8x128xf32>
    %127 = arith.select %125, %126, %123 : vector<8x128xi1>, vector<8x128xf32>
    %128 = vector.broadcast %79 : f32 to vector<8x128xf32>
    %129 = arith.cmpf ogt, %51, %128 : vector<8x128xf32>
    %130 = vector.broadcast %64 : f32 to vector<8x128xf32>
    %131 = arith.select %129, %130, %127 : vector<8x128xi1>, vector<8x128xf32>
    %132 = vector.broadcast %80 : f32 to vector<8x128xf32>
    %133 = arith.cmpf ogt, %51, %132 : vector<8x128xf32>
    %134 = vector.broadcast %65 : f32 to vector<8x128xf32>
    %135 = arith.select %133, %134, %131 : vector<8x128xi1>, vector<8x128xf32>
    %136 = vector.broadcast %81 : f32 to vector<8x128xf32>
    %137 = arith.cmpf ogt, %51, %136 : vector<8x128xf32>
    %138 = vector.broadcast %66 : f32 to vector<8x128xf32>
    %139 = arith.select %137, %138, %135 : vector<8x128xi1>, vector<8x128xf32>
    %140 = vector.broadcast %82 : f32 to vector<8x128xf32>
    %141 = arith.cmpf ogt, %51, %140 : vector<8x128xf32>
    %142 = vector.broadcast %67 : f32 to vector<8x128xf32>
    %143 = arith.select %141, %142, %139 : vector<8x128xi1>, vector<8x128xf32>
    %c0_28 = arith.constant 0 : index
    %c0_29 = arith.constant 0 : index
    %144 = vector.load %arg5[%c0_28, %c0_29] : memref<8x128xf32, #tpu.memory_space<vmem>>, vector<8x128xf32>
    tpu.vector_store %arg5[%c0_28, %c0_29], %143 {strides = array<i32>} : memref<8x128xf32, #tpu.memory_space<vmem>>, vector<8x128xf32>,
    return
  }
  func.func @transform_0(%arg0: i32) -> i32 {
    %c0_i32 = arith.constant 0 : i32
    %c0_i32_0 = arith.constant 0 : i32
    return %c0_i32 : i32
  }
  func.func @transform_1(%arg0: i32) -> i32 {
    %c0_i32 = arith.constant 0 : i32
    %c0_i32_0 = arith.constant 0 : i32
    return %c0_i32 : i32
  }
  func.func @transform_2(%arg0: i32) -> (i32, i32) {
    %c0_i32 = arith.constant 0 : i32
    %c0_i32_0 = arith.constant 0 : i32
    return %arg0, %c0_i32 : i32, i32
  }
  func.func @transform_3(%arg0: i32) -> (i32, i32) {
    %c0_i32 = arith.constant 0 : i32
    %c0_i32_0 = arith.constant 0 : i32
    %c0_i32_1 = arith.constant 0 : i32
    return %c0_i32, %c0_i32_0 : i32, i32
  }
  func.func @transform_4(%arg0: i32) -> (i32, i32) {
    %c0_i32 = arith.constant 0 : i32
    %c0_i32_0 = arith.constant 0 : i32
    return %arg0, %c0_i32 : i32, i32
  }
}

</mosaic_0001>

<llo_original>
// kernel: tpu_custom_call.1
$region0: #{tpu_custom_call.1}
  #allocation0 [shape = 'u32[]', space=smem, size = 0x4, offset = 0x4, fixed_abs, tag = 'smem constant byte address 0x4 - core index']
  #allocation1 [shape = 'u32[144,128]{1,0:T(1,128)}', space=vmem, size = 0x12000, scoped, tag = 'internal scratch']
  %s0 = inlined_call_operand.hbm [shape: f32[16], index: 0, kind: input, shape index: {}]
  %s1 = inlined_call_operand.vmem [shape: f32[15], index: 1, kind: input, shape index: {}]
  %s2 = inlined_call_operand.hbm [shape: f32[16,128], index: 2, kind: input, shape index: {}]
  %s3 = inlined_call_operand.hbm [shape: f32[128,128], index: 3, kind: input, shape index: {}]
  %s4 = inlined_call_operand.hbm [shape: f32[16,128], index: 4, kind: output, shape index: {}]
  %s5 = sld [smem:[#allocation0]]
  $region65: #{tpu_custom_call.1} parent=0
    _
  %s7 = ssub.s32 1, %s5
  %s8 = scalar_select 0, %s7, %s5
  $region1: #{tpu_custom_call.1} parent=0
    #allocation2 [shape = 'u8[512]{0}', space=smem, size = 0x200, scoped, tag = 'input window, operand 0, single buffered']
    #allocation3 [shape = 's32[2]{0}', space=sflag, size = 0x8, scoped, tag = 'scoped memory for tpu_custom_call.1']
    #allocation4 [shape = 's32[2]{0}', space=sflag, size = 0x8, scoped, tag = 'scoped memory for tpu_custom_call.1']
    #allocation5 [shape = 's32[2]{0}', space=sflag, size = 0x8, scoped, tag = 'scoped memory for tpu_custom_call.1']
    #allocation6 [shape = 's32[2]{0}', space=sflag, size = 0x8, scoped, tag = 'scoped memory for tpu_custom_call.1']
    #allocation7 [shape = 'u8[512]{0}', space=smem, size = 0x200, scoped, tag = 'input window, operand 1, single buffered']
    #allocation8 [shape = 'u8[8192]{0}', space=vmem, size = 0x2000, scoped, tag = 'input window, operand 2']
    #allocation9 [shape = 'u8[65536]{0}', space=vmem, size = 0x10000, scoped, tag = 'input window, operand 3, single buffered']
    #allocation10 [shape = 's32[1]{0}', space=sflag, size = 0x4, scoped, tag = 'scoped memory for tpu_custom_call.1']
    #allocation11 [shape = 'u8[8192]{0}', space=vmem, size = 0x2000, scoped, tag = 'output window, operand 0']
    %9 = vsyncpa [#allocation5], 0
    %10 = vsyncpa [#allocation6], 0
    %11 = vsyncpa [#allocation3], 0
    %s12 = scalar_lea.sflag [#allocation3], 1
    %13 = vsyncpa %s12, 0
    %14 = vsyncpa [#allocation10], 0
    %15 = vsyncpa [#allocation4], 0
    %s16 = scalar_lea.sflag [#allocation4], 1
    %17 = vsyncpa %s16, 0
    loop: start=0, step=1, limit=4
    $region2: #{tpu_custom_call.1} parent=1 // loop_pre_header
      _
    $region3: #{tpu_custom_call.1} parent=1 // loop_header
      %s19 = sphi 0, %s23
      %p20 = scmp.ge.s32.totalorder %s19, 4
      %s27 = sphi 0, %s27
      %s29 = sphi 0, %s27
      %s30 = sphi 0, %s29
      %s44 = sphi 0, %s30
      %s48 = sphi 0, %s48
      %s50 = sphi 0, %s48
      %s51 = sphi 0, %s50
      %s65 = sphi 0, %s51
      %s71 = sphi 0, %s73
      %s74 = sphi 0, %s71
      %s75 = sphi 0, %s74
      %s91 = sphi 0, %s75
      %s95 = sphi 0, %s95
      %s97 = sphi 0, %s95
      %s98 = sphi 0, %s97
      %s112 = sphi 0, %s98
      %s118 = sphi 0, %s120
      %s121 = sphi 0, %s118
      %s122 = sphi 0, %s121
      %s138 = sphi 0, %s122
    $region4: #{tpu_custom_call.1} parent=1 // loop_header_branch
      %22 = sbr.rel (%p20) target = $region8
    $region5: #{tpu_custom_call.1} parent=1 // loop_body
      %s24 = ssub.s32 %s19, 1
      %s25 = ssub.s32 %s19, 2
      %s26 = sadd.s32 %s19, 1
      %s28 = sadd.s32 %s27, 1
      %p31 = scmp.eq.s32.totalorder %s19, 1
      %p32 = scmp.ne.s32.totalorder %s27, %s29
      %p33 = scmp.eq.s32.totalorder %s19, 0
      %p34 = por %p32, %p33
      %p35 = scmp.ne.s32.totalorder %s27, %s29
      %p36 = scmp.eq.s32.totalorder %s24, 1
      %p37 = por %p35, %p36
      %p38 = scmp.ne.s32.totalorder %s29, %s30
      %p39 = scmp.eq.s32.totalorder %s24, 0
      %p40 = por %p38, %p39
      %p41 = scmp.ne.s32.totalorder %s29, %s30
      %p42 = scmp.eq.s32.totalorder %s25, 1
      %p43 = por %p41, %p42
      %p45 = scmp.ne.s32.totalorder %s30, %s44
      %p46 = scmp.eq.s32.totalorder %s25, 0
      %p47 = por %p45, %p46
      %s49 = sadd.s32 %s48, 1
      %p52 = scmp.eq.s32.totalorder %s19, 1
      %p53 = scmp.ne.s32.totalorder %s48, %s50
      %p54 = scmp.eq.s32.totalorder %s19, 0
      %p55 = por %p53, %p54
      %p56 = scmp.ne.s32.totalorder %s48, %s50
      %p57 = scmp.eq.s32.totalorder %s24, 1
      %p58 = por %p56, %p57
      %p59 = scmp.ne.s32.totalorder %s50, %s51
      %p60 = scmp.eq.s32.totalorder %s24, 0
      %p61 = por %p59, %p60
      %p62 = scmp.ne.s32.totalorder %s50, %s51
      %p63 = scmp.eq.s32.totalorder %s25, 1
      %p64 = por %p62, %p63
      %p66 = scmp.ne.s32.totalorder %s51, %s65
      %p67 = scmp.eq.s32.totalorder %s25, 0
      %p68 = por %p66, %p67
      %s69 = ssub.s32 %s19, %s26
      %p70 = scmp.eq.s32.totalorder %s69, 0
      %s72 = sadd.s32 %s71, 1
      %s73 = scalar_select %p70, %s71, %s72
      %p76 = pneg %p70
      %p77 = scmp.eq.s32.totalorder %s19, 1
      %p78 = por %p76, %p77
      %p79 = scmp.ne.s32.totalorder %s71, %s74
      %p80 = scmp.eq.s32.totalorder %s19, 0
      %p81 = por %p79, %p80
      %p82 = scmp.ne.s32.totalorder %s71, %s74
      %p83 = scmp.eq.s32.totalorder %s24, 1
      %p84 = por %p82, %p83
      %p85 = scmp.ne.s32.totalorder %s74, %s75
      %p86 = scmp.eq.s32.totalorder %s24, 0
      %p87 = por %p85, %p86
      %p88 = scmp.ne.s32.totalorder %s74, %s75
      %p89 = scmp.eq.s32.totalorder %s25, 1
      %p90 = por %p88, %p89
      %p92 = scmp.ne.s32.totalorder %s75, %s91
      %p93 = scmp.eq.s32.totalorder %s25, 0
      %p94 = por %p92, %p93
      %s96 = sadd.s32 %s95, 1
      %p99 = scmp.eq.s32.totalorder %s19, 1
      %p100 = scmp.ne.s32.totalorder %s95, %s97
      %p101 = scmp.eq.s32.totalorder %s19, 0
      %p102 = por %p100, %p101
      %p103 = scmp.ne.s32.totalorder %s95, %s97
      %p104 = scmp.eq.s32.totalorder %s24, 1
      %p105 = por %p103, %p104
      %p106 = scmp.ne.s32.totalorder %s97, %s98
      %p107 = scmp.eq.s32.totalorder %s24, 0
      %p108 = por %p106, %p107
      %p109 = scmp.ne.s32.totalorder %s97, %s98
      %p110 = scmp.eq.s32.totalorder %s25, 1
      %p111 = por %p109, %p110
      %p113 = scmp.ne.s32.totalorder %s98, %s112
      %p114 = scmp.eq.s32.totalorder %s25, 0
      %p115 = por %p113, %p114
      %s116 = ssub.s32 %s19, %s26
      %p117 = scmp.eq.s32.totalorder %s116, 0
      %s119 = sadd.s32 %s118, 1
      %s120 = scalar_select %p117, %s118, %s119
      %p123 = pneg %p117
      %p124 = scmp.eq.s32.totalorder %s19, 1
      %p125 = por %p123, %p124
      %p126 = scmp.ne.s32.totalorder %s118, %s121
      %p127 = scmp.eq.s32.totalorder %s19, 0
      %p128 = por %p126, %p127
      %p129 = scmp.ne.s32.totalorder %s118, %s121
      %p130 = scmp.eq.s32.totalorder %s24, 1
      %p131 = por %p129, %p130
      %p132 = scmp.ne.s32.totalorder %s121, %s122
      %p133 = scmp.eq.s32.totalorder %s24, 0
      %p134 = por %p132, %p133
      %p135 = scmp.ne.s32.totalorder %s121, %s122
      %p136 = scmp.eq.s32.totalorder %s25, 1
      %p137 = por %p135, %p136
      %p139 = scmp.ne.s32.totalorder %s122, %s138
      %p140 = scmp.eq.s32.totalorder %s25, 0
      %p141 = por %p139, %p140
      %p142 = scmp.le.s32.totalorder 1, %s19
      %p143 = scmp.lt.s32.totalorder %s19, 3
      %p144 = pnand %p142, %p143
      %p145 = pneg %p144
      // Predicated region
      $region9: #{tpu_custom_call.1} parent=5 // pred_check
        _
      $region10: #{tpu_custom_call.1} parent=5 // pred_check_branch
        %147 = sbr.rel (%p144) target = $region12
      $region11: #{tpu_custom_call.1} parent=5 // pred_region
        %s148 = ssub.s32 %s19, 1
        // Predicated region
        $region13: #{tpu_custom_call.1} parent=11 // pred_check
          %p149 = pneg %p40
        $region14: #{tpu_custom_call.1} parent=11 // pred_check_branch
          %151 = sbr.rel (%p149) target = $region16
        $region15: #{tpu_custom_call.1} parent=11 // pred_region
          %s153 = ssub.s32 16, 16
          %154 = vsyncadd [#allocation5], %s153
          %157 = dma.hbm_to_smem %s0, 16, [#allocation2], [#allocation5]
        $region16: #{tpu_custom_call.1} parent=11 // pred_fallthru
          _
        // Predicated region
        $region17: #{tpu_custom_call.1} parent=11 // pred_check
          %p158 = pneg %p61
        $region18: #{tpu_custom_call.1} parent=11 // pred_check_branch
          %160 = sbr.rel (%p158) target = $region20
        $region19: #{tpu_custom_call.1} parent=11 // pred_region
          %s162 = ssub.s32 16, 16
          %163 = vsyncadd [#allocation6], %s162
          %s165 = sshll.u32 %s1, 4
          %s166 = int_to_ptr.vmem [resolvable:$true] %s165
          %168 = dma.vmem_to_smem %s166, 16, [#allocation7], [#allocation6]
        $region20: #{tpu_custom_call.1} parent=11 // pred_fallthru
          _
        // Predicated region
        $region21: #{tpu_custom_call.1} parent=11 // pred_check
          %p169 = pneg %p108
        $region22: #{tpu_custom_call.1} parent=11 // pred_check_branch
          %171 = sbr.rel (%p169) target = $region24
        $region23: #{tpu_custom_call.1} parent=11 // pred_region
          %s173 = ssub.s32 2048, 2048
          %174 = vsyncadd [#allocation10], %s173
          %s175 = sshll.u32 [#allocation9], 4
          %s176 = int_to_ptr.vmem [resolvable:$true] %s175
          %181 = dma.hbm_to_vmem [thread:$0]  %s3, 2048, %s176, [#allocation10], 128, 128, 8
        $region24: #{tpu_custom_call.1} parent=11 // pred_fallthru
          _
      $region12: #{tpu_custom_call.1} parent=5 // pred_fallthru
        _
      %p182 = scmp.lt.s32.totalorder %s19, 2
      // Predicated region
      $region25: #{tpu_custom_call.1} parent=5 // pred_check
        %p183 = pneg %p182
      $region26: #{tpu_custom_call.1} parent=5 // pred_check_branch
        %185 = sbr.rel (%p183) target = $region28
      $region27: #{tpu_custom_call.1} parent=5 // pred_region
        // Predicated region
        $region29: #{tpu_custom_call.1} parent=27 // pred_check
          %p186 = pneg %p81
        $region30: #{tpu_custom_call.1} parent=27 // pred_check_branch
          %188 = sbr.rel (%p186) target = $region32
        $region31: #{tpu_custom_call.1} parent=27 // pred_region
          %s189 = sand.u32 %s71, 1
          %s190 = scalar_lea.sflag [#allocation3], %s189
          %s191 = sand.u32 %s71, 1
          %s192 = smul.addr %s191, 8
          %s193 = scalar_lea.vmem [#allocation8], %s192
          %s195 = ssub.s32 128, 128
          %196 = vsyncadd %s190, %s195
          %s197 = smul.addr %s19, 128
          %s198 = scalar_lea.hbm %s2, %s197
          %s200 = sshll.u32 %s193, 4
          %s201 = int_to_ptr.vmem [resolvable:$true] %s200
          %203 = dma.hbm_to_vmem [thread:$0]  %s198, 128, %s201, %s190
        $region32: #{tpu_custom_call.1} parent=27 // pred_fallthru
          _
      $region28: #{tpu_custom_call.1} parent=5 // pred_fallthru
        _
      %p204 = scmp.le.s32.totalorder 1, %s19
      %p205 = scmp.lt.s32.totalorder %s19, 3
      %p206 = pnand %p204, %p205
      %p207 = pneg %p206
      // Predicated region
      $region33: #{tpu_custom_call.1} parent=5 // pred_check
        _
      $region34: #{tpu_custom_call.1} parent=5 // pred_check_branch
        %209 = sbr.rel (%p206) target = $region36
      $region35: #{tpu_custom_call.1} parent=5 // pred_region
        %s210 = ssub.s32 %s19, 1
        // Predicated region
        $region37: #{tpu_custom_call.1} parent=35 // pred_check
          %p211 = pneg %p40
        $region38: #{tpu_custom_call.1} parent=35 // pred_check_branch
          %213 = sbr.rel (%p211) target = $region40
        $region39: #{tpu_custom_call.1} parent=35 // pred_region
          %214 = dma.done [#allocation5], 16
        $region40: #{tpu_custom_call.1} parent=35 // pred_fallthru
          _
        // Predicated region
        $region41: #{tpu_custom_call.1} parent=35 // pred_check
          %p215 = pneg %p61
        $region42: #{tpu_custom_call.1} parent=35 // pred_check_branch
          %217 = sbr.rel (%p215) target = $region44
        $region43: #{tpu_custom_call.1} parent=35 // pred_region
          %218 = dma.done [#allocation6], 16
        $region44: #{tpu_custom_call.1} parent=35 // pred_fallthru
          _
        %s219 = sand.u32 %s74, 1
        %s220 = scalar_lea.sflag [#allocation3], %s219
        %s221 = sand.u32 %s74, 1
        %s222 = smul.addr %s221, 8
        %s223 = scalar_lea.vmem [#allocation8], %s222
        // Predicated region
        $region45: #{tpu_custom_call.1} parent=35 // pred_check
          %p224 = pneg %p87
        $region46: #{tpu_custom_call.1} parent=35 // pred_check_branch
          %226 = sbr.rel (%p224) target = $region48
        $region47: #{tpu_custom_call.1} parent=35 // pred_region
          %227 = dma.done %s220, 128
        $region48: #{tpu_custom_call.1} parent=35 // pred_fallthru
          _
        // Predicated region
        $region49: #{tpu_custom_call.1} parent=35 // pred_check
          %p228 = pneg %p108
        $region50: #{tpu_custom_call.1} parent=35 // pred_check_branch
          %230 = sbr.rel (%p228) target = $region52
        $region51: #{tpu_custom_call.1} parent=35 // pred_region
          %231 = dma.done [#allocation10], 2048
        $region52: #{tpu_custom_call.1} parent=35 // pred_fallthru
          _
        %232 = sfence
        %p233 = pneg %p40
        %p234 = pneg %p37
        %p235 = pneg %p61
        %p236 = pneg %p58
        %s237 = sand.u32 %s74, 1
        %s238 = scalar_lea.sflag [#allocation3], %s237
        %s239 = sand.u32 %s74, 1
        %s240 = smul.addr %s239, 8
        %s241 = scalar_lea.vmem [#allocation8], %s240
        %p242 = pneg %p87
        %p243 = pneg %p84
        %p244 = pneg %p108
        %p245 = pneg %p105
        %p246 = pneg %p134
        %p247 = pneg %p131
        %s248 = sand.u32 %s121, 1
        %s249 = scalar_lea.sflag [#allocation4], %s248
        %s250 = sand.u32 %s121, 1
        %s251 = smul.addr %s250, 8
        %s252 = scalar_lea.vmem [#allocation11], %s251
        %v253 = vld [vmem:[%s223] sm:$0xff]
        %v254 = vlaneseq
        %v255 = vand.u32 %v254, 127
        %vm256 = vcmp.lt.s32.totalorder %v255, 0
        %v257 = vsub.s32 0, %v255
        %v258 = vsel %vm256, %v257, %v255
        %v259 = vshrl.u32 %v258, 4
        %v260 = vand.u32 %v258, 15
        %v261 = vsub.s32 0, %v260
        %v262 = vsel %vm256, %v261, %v260
        %vm263 = vcmp.ne.s32.totalorder %v262, 0
        %vm264 = vcmp.lt.s32.totalorder %v262, 0
        %vm265 = vmand %vm264, %vm263
        %v266 = vadd.s32 %v262, 16
        %v267 = vsel %vm265, %v266, %v262
        %268 = vrot.lane.b32.xlu0 %v253, 1
        %v269 = vpop.permute.xlu0 %268
        %270 = vrot.lane.b32.xlu0 %v253, 127
        %v271 = vpop.permute.xlu0 %270
        %v272 = vmax.f32 %v269, %v271
        %v273 = vmax.f32 %v253, %v272
        %274 = vrot.lane.b32.xlu0 %v273, 2
        %v275 = vpop.permute.xlu0 %274
        %276 = vrot.lane.b32.xlu0 %v273, 126
        %v277 = vpop.permute.xlu0 %276
        %v278 = vmax.f32 %v275, %v277
        %v279 = vmax.f32 %v273, %v278
        %280 = vrot.lane.b32.xlu0 %v279, 4
        %v281 = vpop.permute.xlu0 %280
        %282 = vrot.lane.b32.xlu0 %v279, 124
        %v283 = vpop.permute.xlu0 %282
        %v284 = vmax.f32 %v281, %v283
        %v285 = vmax.f32 %v279, %v284
        %v286 = vld [vmem:[#allocation9] sm:$0xff]
        %v287 = vld [vmem:[#allocation9 + $0x8] sm:$0xff]
        %v288 = vld [vmem:[#allocation9 + $0x10] sm:$0xff]
        %v289 = vld [vmem:[#allocation9 + $0x18] sm:$0xff]
        %v290 = vld [vmem:[#allocation9 + $0x20] sm:$0xff]
        %v291 = vld [vmem:[#allocation9 + $0x28] sm:$0xff]
        %v292 = vld [vmem:[#allocation9 + $0x30] sm:$0xff]
        %v293 = vld [vmem:[#allocation9 + $0x38] sm:$0xff]
        %v294 = vld [vmem:[#allocation9 + $0x40] sm:$0xff]
        %v295 = vld [vmem:[#allocation9 + $0x48] sm:$0xff]
        %v296 = vld [vmem:[#allocation9 + $0x50] sm:$0xff]
        %v297 = vld [vmem:[#allocation9 + $0x58] sm:$0xff]
        %v298 = vld [vmem:[#allocation9 + $0x60] sm:$0xff]
        %v299 = vld [vmem:[#allocation9 + $0x68] sm:$0xff]
        %v300 = vld [vmem:[#allocation9 + $0x70] sm:$0xff]
        %v301 = vld [vmem:[#allocation9 + $0x78] sm:$0xff]
        %vm302 = vcmp.eq.s32.totalorder %v267, 7
        %v303 = vsel %vm302, %v285, 0.0
        %vm304 = vcmp.eq.s32.totalorder %v267, 8
        %v305 = vsel %vm304, %v285, 0.0
        %306 = vmatprep.subr.mxu0 0.0
        %307 = vmatpush1.msra.mxu0 %v286
        %308 = vmatprep.subr.mxu0 0.0
        %309 = vmatpush1.msra.mxu0 %v287
        %310 = vmatprep.subr.mxu0 0.0
        %311 = vmatpush1.msra.mxu0 %v288
        %312 = vmatprep.subr.mxu0 0.0
        %313 = vmatpush1.msra.mxu0 %v289
        %314 = vmatprep.subr.mxu0 0.0
        %315 = vmatpush1.msra.mxu0 %v290
        %316 = vmatprep.subr.mxu0 0.0
        %317 = vmatpush1.msra.mxu0 %v291
        %318 = vmatprep.subr.mxu0 0.0
        %319 = vmatpush1.msra.mxu0 %v292
        %320 = vmatprep.subr.mxu0 0.0
        %321 = vmatpush1.msra.mxu0 %v293
        %322 = vmatprep.subr.mxu0 0.0
        %323 = vmatpush1.msra.mxu0 %v294
        %324 = vmatprep.subr.mxu0 0.0
        %325 = vmatpush1.msra.mxu0 %v295
        %326 = vmatprep.subr.mxu0 0.0
        %327 = vmatpush1.msra.mxu0 %v296
        %328 = vmatprep.subr.mxu0 0.0
        %329 = vmatpush1.msra.mxu0 %v297
        %330 = vmatprep.subr.mxu0 0.0
        %331 = vmatpush1.msra.mxu0 %v298
        %332 = vmatprep.subr.mxu0 0.0
        %333 = vmatpush1.msra.mxu0 %v299
        %334 = vmatprep.subr.mxu0 0.0
        %335 = vmatpush1.msra.mxu0 %v300
        %336 = vmatprep.subr.mxu0 0.0
        %337 = vmatpush1.msra.mxu0 %v301
        %338 = vmatprep.subr.mxu0 0.0
        %339 = vmatpush1.msra.mxu0 0.0
        %340 = vmatprep.subr.mxu0 0.0
        %341 = vmatpush1.msra.mxu0 0.0
        %342 = vmatprep.subr.mxu0 0.0
        %343 = vmatpush1.msra.mxu0 0.0
        %344 = vmatprep.subr.mxu0 0.0
        %345 = vmatpush1.msra.mxu0 0.0
        %346 = vmatprep.subr.mxu0 0.0
        %347 = vmatpush1.msra.mxu0 0.0
        %348 = vmatprep.subr.mxu0 0.0
        %349 = vmatpush1.msra.mxu0 0.0
        %350 = vmatprep.subr.mxu0 0.0
        %351 = vmatpush1.msra.mxu0 0.0
        %352 = vmatprep.subr.mxu0 0.0
        %353 = vmatpush1.msra.mxu0 0.0
        %354 = vmatprep.subr.mxu0 0.0
        %355 = vmatpush1.msra.mxu0 0.0
        %356 = vmatprep.subr.mxu0 0.0
        %357 = vmatpush1.msra.mxu0 0.0
        %358 = vmatprep.subr.mxu0 0.0
        %359 = vmatpush1.msra.mxu0 0.0
        %360 = vmatprep.subr.mxu0 0.0
        %361 = vmatpush1.msra.mxu0 0.0
        %362 = vmatprep.subr.mxu0 0.0
        %363 = vmatpush1.msra.mxu0 0.0
        %364 = vmatprep.subr.mxu0 0.0
        %365 = vmatpush1.msra.mxu0 0.0
        %366 = vmatprep.subr.mxu0 0.0
        %367 = vmatpush1.msra.mxu0 0.0
        %368 = vmatprep.subr.mxu0 0.0
        %369 = vmatpush1.msra.mxu0 0.0
        %370 = vmatprep.mubr.f32.mxu0 0.0
        %371 = vmatmul.mubr.f32.gmra.mrb[0].mxu0 %v303
        %v372 = vpop.f32.mrb[0].mxu0
        %v373 = vadd.f32 0.0, %v372
        %v374 = vpop.f32.mrb[0].mxu0
        %375 = vdwg.mxu0
        %376 = vmatprep.subr.mxu0 0.0
        %377 = vmatpush1.msra.mxu0 %v286
        %378 = vmatprep.subr.mxu0 0.0
        %379 = vmatpush1.msra.mxu0 %v287
        %380 = vmatprep.subr.mxu0 0.0
        %381 = vmatpush1.msra.mxu0 %v288
        %382 = vmatprep.subr.mxu0 0.0
        %383 = vmatpush1.msra.mxu0 %v289
        %384 = vmatprep.subr.mxu0 0.0
        %385 = vmatpush1.msra.mxu0 %v290
        %386 = vmatprep.subr.mxu0 0.0
        %387 = vmatpush1.msra.mxu0 %v291
        %388 = vmatprep.subr.mxu0 0.0
        %389 = vmatpush1.msra.mxu0 %v292
        %390 = vmatprep.subr.mxu0 0.0
        %391 = vmatpush1.msra.mxu0 %v293
        %392 = vmatprep.subr.mxu0 0.0
        %393 = vmatpush1.msra.mxu0 %v294
        %394 = vmatprep.subr.mxu0 0.0
        %395 = vmatpush1.msra.mxu0 %v295
        %396 = vmatprep.subr.mxu0 0.0
        %397 = vmatpush1.msra.mxu0 %v296
        %398 = vmatprep.subr.mxu0 0.0
        %399 = vmatpush1.msra.mxu0 %v297
        %400 = vmatprep.subr.mxu0 0.0
        %401 = vmatpush1.msra.mxu0 %v298
        %402 = vmatprep.subr.mxu0 0.0
        %403 = vmatpush1.msra.mxu0 %v299
        %404 = vmatprep.subr.mxu0 0.0
        %405 = vmatpush1.msra.mxu0 %v300
        %406 = vmatprep.subr.mxu0 0.0
        %407 = vmatpush1.msra.mxu0 %v301
        %408 = vmatprep.subr.mxu0 0.0
        %409 = vmatpush1.msra.mxu0 0.0
        %410 = vmatprep.subr.mxu0 0.0
        %411 = vmatpush1.msra.mxu0 0.0
        %412 = vmatprep.subr.mxu0 0.0
        %413 = vmatpush1.msra.mxu0 0.0
        %414 = vmatprep.subr.mxu0 0.0
        %415 = vmatpush1.msra.mxu0 0.0
        %416 = vmatprep.subr.mxu0 0.0
        %417 = vmatpush1.msra.mxu0 0.0
        %418 = vmatprep.subr.mxu0 0.0
        %419 = vmatpush1.msra.mxu0 0.0
        %420 = vmatprep.subr.mxu0 0.0
        %421 = vmatpush1.msra.mxu0 0.0
        %422 = vmatprep.subr.mxu0 0.0
        %423 = vmatpush1.msra.mxu0 0.0
        %424 = vmatprep.subr.mxu0 0.0
        %425 = vmatpush1.msra.mxu0 0.0
        %426 = vmatprep.subr.mxu0 0.0
        %427 = vmatpush1.msra.mxu0 0.0
        %428 = vmatprep.subr.mxu0 0.0
        %429 = vmatpush1.msra.mxu0 0.0
        %430 = vmatprep.subr.mxu0 0.0
        %431 = vmatpush1.msra.mxu0 0.0
        %432 = vmatprep.subr.mxu0 0.0
        %433 = vmatpush1.msra.mxu0 0.0
        %434 = vmatprep.subr.mxu0 0.0
        %435 = vmatpush1.msra.mxu0 0.0
        %436 = vmatprep.subr.mxu0 0.0
        %437 = vmatpush1.msra.mxu0 0.0
        %438 = vmatprep.subr.mxu0 0.0
        %439 = vmatpush1.msra.mxu0 0.0
        %440 = vmatprep.mubr.f32.mxu0 0.0
        %441 = vmatmul.mubr.f32.gmra.mrb[0].mxu0 %v305
        %v442 = vpop.f32.mrb[0].mxu0
        %v443 = vadd.f32 0.0, %v442
        %v444 = vpop.f32.mrb[0].mxu0
        %445 = vdwg.mxu0
        %v446 = vmax.f32 %v373, %v443
        %v447 = vsub.f32 %v253, %v446
        %v448 = vmul.f32 %v447, 1.442695
        %v449 = vpow.pop %v448
        %v450 = vpack.c.bf16 %v449, %v449
        %v451 = vunpack.c.l.bf16 %v450
        %v452 = vsub.f32 %v449, %v451
        %453 = vmatprep.subr.mxu0 0.0
        %454 = vmatpush1.msra.mxu0 %v286
        %455 = vmatprep.subr.mxu0 0.0
        %456 = vmatpush1.msra.mxu0 %v287
        %457 = vmatprep.subr.mxu0 0.0
        %458 = vmatpush1.msra.mxu0 %v288
        %459 = vmatprep.subr.mxu0 0.0
        %460 = vmatpush1.msra.mxu0 %v289
        %461 = vmatprep.subr.mxu0 0.0
        %462 = vmatpush1.msra.mxu0 %v290
        %463 = vmatprep.subr.mxu0 0.0
        %464 = vmatpush1.msra.mxu0 %v291
        %465 = vmatprep.subr.mxu0 0.0
        %466 = vmatpush1.msra.mxu0 %v292
        %467 = vmatprep.subr.mxu0 0.0
        %468 = vmatpush1.msra.mxu0 %v293
        %469 = vmatprep.subr.mxu0 0.0
        %470 = vmatpush1.msra.mxu0 %v294
        %471 = vmatprep.subr.mxu0 0.0
        %472 = vmatpush1.msra.mxu0 %v295
        %473 = vmatprep.subr.mxu0 0.0
        %474 = vmatpush1.msra.mxu0 %v296
        %475 = vmatprep.subr.mxu0 0.0
        %476 = vmatpush1.msra.mxu0 %v297
        %477 = vmatprep.subr.mxu0 0.0
        %478 = vmatpush1.msra.mxu0 %v298
        %479 = vmatprep.subr.mxu0 0.0
        %480 = vmatpush1.msra.mxu0 %v299
        %481 = vmatprep.subr.mxu0 0.0
        %482 = vmatpush1.msra.mxu0 %v300
        %483 = vmatprep.subr.mxu0 0.0
        %484 = vmatpush1.msra.mxu0 %v301
        %485 = vmatprep.subr.mxu0 0.0
        %486 = vmatpush1.msra.mxu0 0.0
        %487 = vmatprep.subr.mxu0 0.0
        %488 = vmatpush1.msra.mxu0 0.0
        %489 = vmatprep.subr.mxu0 0.0
        %490 = vmatpush1.msra.mxu0 0.0
        %491 = vmatprep.subr.mxu0 0.0
        %492 = vmatpush1.msra.mxu0 0.0
        %493 = vmatprep.subr.mxu0 0.0
        %494 = vmatpush1.msra.mxu0 0.0
        %495 = vmatprep.subr.mxu0 0.0
        %496 = vmatpush1.msra.mxu0 0.0
        %497 = vmatprep.subr.mxu0 0.0
        %498 = vmatpush1.msra.mxu0 0.0
        %499 = vmatprep.subr.mxu0 0.0
        %500 = vmatpush1.msra.mxu0 0.0
        %501 = vmatprep.subr.mxu0 0.0
        %502 = vmatpush1.msra.mxu0 0.0
        %503 = vmatprep.subr.mxu0 0.0
        %504 = vmatpush1.msra.mxu0 0.0
        %505 = vmatprep.subr.mxu0 0.0
        %506 = vmatpush1.msra.mxu0 0.0
        %507 = vmatprep.subr.mxu0 0.0
        %508 = vmatpush1.msra.mxu0 0.0
        %509 = vmatprep.subr.mxu0 0.0
        %510 = vmatpush1.msra.mxu0 0.0
        %511 = vmatprep.subr.mxu0 0.0
        %512 = vmatpush1.msra.mxu0 0.0
        %513 = vmatprep.subr.mxu0 0.0
        %514 = vmatpush1.msra.mxu0 0.0
        %515 = vmatprep.subr.mxu0 0.0
        %516 = vmatpush1.msra.mxu0 0.0
        %517 = vmatprep.mubr.f32.mxu0 0.0
        %518 = vmatmul.mubr.f32.gmra.mrb[0].mxu0 %v452
        %v519 = vpop.f32.mrb[0].mxu0
        %v520 = vadd.f32 0.0, %v519
        %v521 = vpop.f32.mrb[0].mxu0
        %522 = vdwg.mxu0
        %523 = vmatprep.subr.mxu0 0.0
        %524 = vmatpush1.msra.mxu0 %v286
        %525 = vmatprep.subr.mxu0 0.0
        %526 = vmatpush1.msra.mxu0 %v287
        %527 = vmatprep.subr.mxu0 0.0
        %528 = vmatpush1.msra.mxu0 %v288
        %529 = vmatprep.subr.mxu0 0.0
        %530 = vmatpush1.msra.mxu0 %v289
        %531 = vmatprep.subr.mxu0 0.0
        %532 = vmatpush1.msra.mxu0 %v290
        %533 = vmatprep.subr.mxu0 0.0
        %534 = vmatpush1.msra.mxu0 %v291
        %535 = vmatprep.subr.mxu0 0.0
        %536 = vmatpush1.msra.mxu0 %v292
        %537 = vmatprep.subr.mxu0 0.0
        %538 = vmatpush1.msra.mxu0 %v293
        %539 = vmatprep.subr.mxu0 0.0
        %540 = vmatpush1.msra.mxu0 %v294
        %541 = vmatprep.subr.mxu0 0.0
        %542 = vmatpush1.msra.mxu0 %v295
        %543 = vmatprep.subr.mxu0 0.0
        %544 = vmatpush1.msra.mxu0 %v296
        %545 = vmatprep.subr.mxu0 0.0
        %546 = vmatpush1.msra.mxu0 %v297
        %547 = vmatprep.subr.mxu0 0.0
        %548 = vmatpush1.msra.mxu0 %v298
        %549 = vmatprep.subr.mxu0 0.0
        %550 = vmatpush1.msra.mxu0 %v299
        %551 = vmatprep.subr.mxu0 0.0
        %552 = vmatpush1.msra.mxu0 %v300
        %553 = vmatprep.subr.mxu0 0.0
        %554 = vmatpush1.msra.mxu0 %v301
        %555 = vmatprep.subr.mxu0 0.0
        %556 = vmatpush1.msra.mxu0 0.0
        %557 = vmatprep.subr.mxu0 0.0
        %558 = vmatpush1.msra.mxu0 0.0
        %559 = vmatprep.subr.mxu0 0.0
        %560 = vmatpush1.msra.mxu0 0.0
        %561 = vmatprep.subr.mxu0 0.0
        %562 = vmatpush1.msra.mxu0 0.0
        %563 = vmatprep.subr.mxu0 0.0
        %564 = vmatpush1.msra.mxu0 0.0
        %565 = vmatprep.subr.mxu0 0.0
        %566 = vmatpush1.msra.mxu0 0.0
        %567 = vmatprep.subr.mxu0 0.0
        %568 = vmatpush1.msra.mxu0 0.0
        %569 = vmatprep.subr.mxu0 0.0
        %570 = vmatpush1.msra.mxu0 0.0
        %571 = vmatprep.subr.mxu0 0.0
        %572 = vmatpush1.msra.mxu0 0.0
        %573 = vmatprep.subr.mxu0 0.0
        %574 = vmatpush1.msra.mxu0 0.0
        %575 = vmatprep.subr.mxu0 0.0
        %576 = vmatpush1.msra.mxu0 0.0
        %577 = vmatprep.subr.mxu0 0.0
        %578 = vmatpush1.msra.mxu0 0.0
        %579 = vmatprep.subr.mxu0 0.0
        %580 = vmatpush1.msra.mxu0 0.0
        %581 = vmatprep.subr.mxu0 0.0
        %582 = vmatpush1.msra.mxu0 0.0
        %583 = vmatprep.subr.mxu0 0.0
        %584 = vmatpush1.msra.mxu0 0.0
        %585 = vmatprep.subr.mxu0 0.0
        %586 = vmatpush1.msra.mxu0 0.0
        %587 = vmatprep.mubr.f32.mxu0 0.0
        %588 = vmatmul.mubr.f32.gmra.mrb[0].mxu0 %v451
        %v589 = vpop.f32.mrb[0].mxu0
        %v590 = vadd.f32 %v520, %v589
        %v591 = vpop.f32.mrb[0].mxu0
        %592 = vdwg.mxu0
        %v593 = vrcp.pop %v590
        %v594 = vmul.f32 %v449, %v593
        %s595 = sld [smem:[#allocation2]]
        %s596 = sld [smem:[#allocation2 + $0x1]]
        %s597 = sld [smem:[#allocation2 + $0x2]]
        %s598 = sld [smem:[#allocation2 + $0x3]]
        %s599 = sld [smem:[#allocation2 + $0x4]]
        %s600 = sld [smem:[#allocation2 + $0x5]]
        %s601 = sld [smem:[#allocation2 + $0x6]]
        %s602 = sld [smem:[#allocation2 + $0x7]]
        %s603 = sld [smem:[#allocation2 + $0x8]]
        %s604 = sld [smem:[#allocation2 + $0x9]]
        %s605 = sld [smem:[#allocation2 + $0xa]]
        %s606 = sld [smem:[#allocation2 + $0xb]]
        %s607 = sld [smem:[#allocation2 + $0xc]]
        %s608 = sld [smem:[#allocation2 + $0xd]]
        %s609 = sld [smem:[#allocation2 + $0xe]]
        %s610 = sld [smem:[#allocation2 + $0xf]]
        %s611 = sld [smem:[#allocation7]]
        %s612 = sld [smem:[#allocation7 + $0x1]]
        %s613 = sld [smem:[#allocation7 + $0x2]]
        %s614 = sld [smem:[#allocation7 + $0x3]]
        %s615 = sld [smem:[#allocation7 + $0x4]]
        %s616 = sld [smem:[#allocation7 + $0x5]]
        %s617 = sld [smem:[#allocation7 + $0x6]]
        %s618 = sld [smem:[#allocation7 + $0x7]]
        %s619 = sld [smem:[#allocation7 + $0x8]]
        %s620 = sld [smem:[#allocation7 + $0x9]]
        %s621 = sld [smem:[#allocation7 + $0xa]]
        %s622 = sld [smem:[#allocation7 + $0xb]]
        %s623 = sld [smem:[#allocation7 + $0xc]]
        %s624 = sld [smem:[#allocation7 + $0xd]]
        %s625 = sld [smem:[#allocation7 + $0xe]]
        %v626 = vstv %s611
        %vm627 = vcmp.gt.f32.partialorder %v594, %v626
        %v628 = vstv %s596
        %v629 = vstv %s595
        %v630 = vsel %vm627, %v628, %v629
        %v631 = vstv %s612
        %vm632 = vcmp.gt.f32.partialorder %v594, %v631
        %v633 = vstv %s597
        %v634 = vsel %vm632, %v633, %v630
        %v635 = vstv %s613
        %vm636 = vcmp.gt.f32.partialorder %v594, %v635
        %v637 = vstv %s598
        %v638 = vsel %vm636, %v637, %v634
        %v639 = vstv %s614
        %vm640 = vcmp.gt.f32.partialorder %v594, %v639
        %v641 = vstv %s599
        %v642 = vsel %vm640, %v641, %v638
        %v643 = vstv %s615
        %vm644 = vcmp.gt.f32.partialorder %v594, %v643
        %v645 = vstv %s600
        %v646 = vsel %vm644, %v645, %v642
        %v647 = vstv %s616
        %vm648 = vcmp.gt.f32.partialorder %v594, %v647
        %v649 = vstv %s601
        %v650 = vsel %vm648, %v649, %v646
        %v651 = vstv %s617
        %vm652 = vcmp.gt.f32.partialorder %v594, %v651
        %v653 = vstv %s602
        %v654 = vsel %vm652, %v653, %v650
        %v655 = vstv %s618
        %vm656 = vcmp.gt.f32.partialorder %v594, %v655
        %v657 = vstv %s603
        %v658 = vsel %vm656, %v657, %v654
        %v659 = vstv %s619
        %vm660 = vcmp.gt.f32.partialorder %v594, %v659
        %v661 = vstv %s604
        %v662 = vsel %vm660, %v661, %v658
        %v663 = vstv %s620
        %vm664 = vcmp.gt.f32.partialorder %v594, %v663
        %v665 = vstv %s605
        %v666 = vsel %vm664, %v665, %v662
        %v667 = vstv %s621
        %vm668 = vcmp.gt.f32.partialorder %v594, %v667
        %v669 = vstv %s606
        %v670 = vsel %vm668, %v669, %v666
        %v671 = vstv %s622
        %vm672 = vcmp.gt.f32.partialorder %v594, %v671
        %v673 = vstv %s607
        %v674 = vsel %vm672, %v673, %v670
        %v675 = vstv %s623
        %vm676 = vcmp.gt.f32.partialorder %v594, %v675
        %v677 = vstv %s608
        %v678 = vsel %vm676, %v677, %v674
        %v679 = vstv %s624
        %vm680 = vcmp.gt.f32.partialorder %v594, %v679
        %v681 = vstv %s609
        %v682 = vsel %vm680, %v681, %v678
        %v683 = vstv %s625
        %vm684 = vcmp.gt.f32.partialorder %v594, %v683
        %v685 = vstv %s610
        %v686 = vsel %vm684, %v685, %v682
        %687 = vst [vmem:[%s252] sm:$0xff] %v686
        %s688 = sand.u32 %s121, 1
        %s689 = scalar_lea.sflag [#allocation4], %s688
        %s690 = sand.u32 %s121, 1
        %s691 = smul.addr %s690, 8
        %s692 = scalar_lea.vmem [#allocation11], %s691
        // Predicated region
        $region53: #{tpu_custom_call.1} parent=35 // pred_check
          %p693 = pneg %p131
        $region54: #{tpu_custom_call.1} parent=35 // pred_check_branch
          %695 = sbr.rel (%p693) target = $region56
        $region55: #{tpu_custom_call.1} parent=35 // pred_region
          %s697 = ssub.s32 128, 128
          %698 = vsyncadd %s689, %s697
          %s699 = smul.addr %s24, 128
          %s700 = scalar_lea.hbm %s4, %s699
          %s702 = sshll.u32 %s692, 4
          %s703 = int_to_ptr.vmem [resolvable:$true] %s702
          %705 = dma.vmem_to_hbm [thread:$0]  %s703, 128, %s700, %s689
        $region56: #{tpu_custom_call.1} parent=35 // pred_fallthru
          _
      $region36: #{tpu_custom_call.1} parent=5 // pred_fallthru
        _
      %p706 = scmp.le.s32.totalorder 2, %s19
      // Predicated region
      $region57: #{tpu_custom_call.1} parent=5 // pred_check
        %p707 = pneg %p706
      $region58: #{tpu_custom_call.1} parent=5 // pred_check_branch
        %709 = sbr.rel (%p707) target = $region60
      $region59: #{tpu_custom_call.1} parent=5 // pred_region
        %s710 = ssub.s32 %s19, 2
        // Predicated region
        $region61: #{tpu_custom_call.1} parent=59 // pred_check
          %p711 = pneg %p137
        $region62: #{tpu_custom_call.1} parent=59 // pred_check_branch
          %713 = sbr.rel (%p711) target = $region64
        $region63: #{tpu_custom_call.1} parent=59 // pred_region
          %s714 = sand.u32 %s122, 1
          %s715 = scalar_lea.sflag [#allocation4], %s714
          %s716 = sand.u32 %s122, 1
          %s717 = smul.addr %s716, 8
          %s718 = scalar_lea.vmem [#allocation11], %s717
          %719 = dma.done %s715, 128
        $region64: #{tpu_custom_call.1} parent=59 // pred_fallthru
          _
      $region60: #{tpu_custom_call.1} parent=5 // pred_fallthru
        _
    $region6: #{tpu_custom_call.1} parent=1 // loop_footer
      %s23 = sadd.s32 1, %s19
    $region7: #{tpu_custom_call.1} parent=1 // loop_footer_branch
      %18 = sbr.rel target = $region3
    $region8: #{tpu_custom_call.1} parent=1 // loop_exit
      _
    %720 = vsyncpa [#allocation3], 1
    %s721 = scalar_lea.sflag [#allocation3], 1
    %722 = vsyncpa %s721, 1
    %723 = vsyncpa [#allocation10], 1
    %724 = vsyncpa [#allocation4], 1
    %s725 = scalar_lea.sflag [#allocation4], 1
    %726 = vsyncpa %s725, 1
    %727 = vsyncpa [#allocation5], 1
    %s728 = scalar_lea.sflag [#allocation5], 1
    %729 = vsyncpa %s728, 1
    %730 = vsyncpa [#allocation6], 1
    %s731 = scalar_lea.sflag [#allocation6], 1
    %732 = vsyncpa %s731, 1

</llo_original>
